<compile_context>
chip_gen: v5e
topology: v5e:2x2
jax: 0.10.0
libtpu: 0.0.40
codegen_flags: <defaults>
</compile_context>

<pallas_src>
import functools

import jax
import jax.numpy as jnp
from jax import lax
from jax.experimental import pallas as pl
from jax.experimental.pallas import tpu as pltpu

LANES = 128
SUBLANES = 8
TILE_ROWS_MAX = 1024     # 1024*128*4B = 512 KiB per input block (throughput plateau zone)


def _cdiv(a, b):
    return -(-a // b)


def _round_up(a, b):
    return _cdiv(a, b) * b


def _ordinal_loss_kernel(pred_ref, act_ref, out_ref, *,
                         n_valid, tile_rows, inner_steps, need_mask):
    i = pl.program_id(1)

    @pl.when(i == 0)
    def _():
        out_ref[...] = jnp.zeros_like(out_ref)

    p = pred_ref[...].astype(jnp.float32)   # upcast in-kernel (free VPU op)
    a = act_ref[...].astype(jnp.float32)

    if need_mask:  # static: only emitted when padding / partial blocks exist
        c = pl.program_id(0)
        row = lax.broadcasted_iota(jnp.int32, (tile_rows, LANES), 0)
        col = lax.broadcasted_iota(jnp.int32, (tile_rows, LANES), 1)
        flat = ((c * inner_steps + i) * tile_rows + row) * LANES + col
        mask = flat < n_valid
        p = jnp.where(mask, p, jnp.float32(0.5))   # keep log() finite on pad/OOB
        a = jnp.where(mask, a, jnp.float32(0.0))

    # Keep the general a*log(p) + (1-a)*log(1-p) form: `actual` is not guaranteed
    # binary by the module, so the single-log trick would change semantics.
    bce = a * jnp.log(p) + (1.0 - a) * jnp.log(1.0 - p)
    if need_mask:
        bce = jnp.where(mask, bce, jnp.float32(0.0))

    # Fold the (tile_rows,128) tile onto an (8,128) vreg accumulator: pure
    # elementwise vreg adds on the VPU (layout-aligned reshape, no copy); the
    # expensive cross-lane reduce happens exactly once, in the wrapper.
    partial = jnp.sum(bce.reshape(tile_rows // SUBLANES, SUBLANES, LANES), axis=0)
    out_ref[0] += partial


@jax.jit
def ordinal_loss(predicted, actual):
    """Pallas TPU implementation of  -sum(a*log(p) + (1-a)*log(1-p))."""
    n = predicted.size
    pred_flat = predicted.reshape(-1)   # keep native dtype: no wrapper astype copy
    act_flat = actual.reshape(-1)

    rows = _cdiv(n, LANES)
    tail_pad = rows * LANES - n
    if tail_pad:
        # Fallback only when n % 128 != 0; padded tail is masked out in-kernel.
        pred_flat = jnp.pad(pred_flat, (0, tail_pad), constant_values=0.5)
        act_flat = jnp.pad(act_flat, (0, tail_pad), constant_values=0.0)
    pred2d = pred_flat.reshape(rows, LANES)
    act2d = act_flat.reshape(rows, LANES)

    # Big tiles for the streaming path; single block for small inputs.
    tile_rows = min(TILE_ROWS_MAX, _round_up(rows, SUBLANES))
    num_blocks = _cdiv(rows, tile_rows)
    if num_blocks >= 4 and num_blocks % 2 == 0:
        n_outer, inner = 2, num_blocks // 2     # v7x: one outer index per TensorCore
    else:
        n_outer, inner = 1, num_blocks          # small / odd-count input: single outer step

    need_mask = n != n_outer * inner * tile_rows * LANES

    kernel = functools.partial(
        _ordinal_loss_kernel,
        n_valid=n, tile_rows=tile_rows, inner_steps=inner, need_mask=need_mask)

    partials = pl.pallas_call(
        kernel,
        out_shape=jax.ShapeDtypeStruct((n_outer, SUBLANES, LANES), jnp.float32),
        grid_spec=pltpu.PrefetchScalarGridSpec(
            num_scalar_prefetch=0,
            grid=(n_outer, inner),
            in_specs=[
                pl.BlockSpec((tile_rows, LANES), lambda c, i: (c * inner + i, 0)),
                pl.BlockSpec((tile_rows, LANES), lambda c, i: (c * inner + i, 0)),
            ],
            out_specs=pl.BlockSpec((1, SUBLANES, LANES), lambda c, i: (c, 0, 0)),
        ),
        compiler_params=pltpu.CompilerParams(
            dimension_semantics=("parallel", "arbitrary")),
    )(pred2d, act2d)

    # Tiny final cross-lane reduce + negate outside the kernel.
    return -jnp.sum(partials)


def _reference(predicted, actual):
    bce = actual * jnp.log(predicted) + (1.0 - actual) * jnp.log(1.0 - predicted)
    return -jnp.sum(bce)


if __name__ == "__main__":
    key = jax.random.PRNGKey(0)
    k1, k2 = jax.random.split(key)
    shape = (2, 4, 16, 16)
    # predicted must be in (0, 1) for log / log(1-p) to be finite (same implicit
    # requirement as the PyTorch module).
    predicted = jax.random.uniform(k1, shape, jnp.float32, minval=0.05, maxval=0.95)
    actual = (jax.random.uniform(k2, shape, jnp.float32) > 0.5).astype(jnp.float32)

    out = ordinal_loss(predicted, actual)
    out = jax.block_until_ready(out)

    ref = _reference(predicted, actual)
    assert jnp.allclose(out, ref, rtol=1e-5, atol=1e-4), (out, ref)
    print("KERNEL_OK")
</pallas_src>

<mosaic_0001>
module attributes {stable_mosaic.version = 11 : i64} {
  func.func @_ordinal_loss_kernel(%arg0: i32, %arg1: i32, %arg2: memref<16x128xf32, #tpu.memory_space<vmem>>, %arg3: memref<16x128xf32, #tpu.memory_space<vmem>>, %arg4: memref<1x8x128xf32, #tpu.memory_space<vmem>>) attributes {dimension_semantics = [#tpu.dimension_semantics<parallel>, #tpu.dimension_semantics<arbitrary>], iteration_bounds = array<i64: 1, 1>, scalar_prefetch = 0 : i64, scratch_operands = 0 : i64, tpu.core_type = #tpu.core_type<tc>, window_params = [{transform_indices = @transform_0, window_bounds = array<i64: 16, 128>}, {transform_indices = @transform_1, window_bounds = array<i64: 16, 128>}, {transform_indices = @transform_2, window_bounds = array<i64: 1, 8, 128>}]} {
    %c0_i32 = arith.constant 0 : i32
    %0 = arith.cmpi eq, %arg1, %c0_i32 : i32
    %1 = arith.extui %0 : i1 to i32
    %c0_i32_0 = arith.constant 0 : i32
    %2 = arith.cmpi ne, %1, %c0_i32_0 : i32
    scf.if %2 {
      %cst_12 = arith.constant 0.000000e+00 : f32
      %22 = vector.broadcast %cst_12 : f32 to vector<1x8x128xf32>
      %c0_13 = arith.constant 0 : index
      %c0_14 = arith.constant 0 : index
      %c0_15 = arith.constant 0 : index
      %23 = vector.load %arg4[%c0_13, %c0_14, %c0_15] : memref<1x8x128xf32, #tpu.memory_space<vmem>>, vector<1x8x128xf32>
      tpu.vector_store %arg4[%c0_13, %c0_14, %c0_15], %22 {strides = array<i32>} : memref<1x8x128xf32, #tpu.memory_space<vmem>>, vector<1x8x128xf32>,
    } else {
    }
    %c0 = arith.constant 0 : index
    %c0_1 = arith.constant 0 : index
    %3 = vector.load %arg2[%c0, %c0_1] : memref<16x128xf32, #tpu.memory_space<vmem>>, vector<16x128xf32>
    %c0_2 = arith.constant 0 : index
    %c0_3 = arith.constant 0 : index
    %4 = vector.load %arg3[%c0_2, %c0_3] : memref<16x128xf32, #tpu.memory_space<vmem>>, vector<16x128xf32>
    %5 = math.log %3 : vector<16x128xf32>
    %6 = arith.mulf %4, %5 : vector<16x128xf32>
    %cst = arith.constant 1.000000e+00 : f32
    %7 = vector.broadcast %cst : f32 to vector<16x128xf32>
    %8 = arith.subf %7, %4 : vector<16x128xf32>
    %cst_4 = arith.constant 1.000000e+00 : f32
    %9 = vector.broadcast %cst_4 : f32 to vector<16x128xf32>
    %10 = arith.subf %9, %3 : vector<16x128xf32>
    %11 = math.log %10 : vector<16x128xf32>
    %12 = arith.mulf %8, %11 : vector<16x128xf32>
    %13 = arith.addf %6, %12 : vector<16x128xf32>
    %14 = vector.shape_cast %13 : vector<16x128xf32> to vector<2x8x128xf32>
    %cst_5 = arith.constant dense<0.000000e+00> : vector<8x128xf32>
    %15 = vector.multi_reduction <add>, %14, %cst_5 [0] : vector<2x8x128xf32> to vector<8x128xf32>
    %c0_6 = arith.constant 0 : index
    %c0_7 = arith.constant 0 : index
    %c0_8 = arith.constant 0 : index
    %16 = vector.load %arg4[%c0_6, %c0_7, %c0_8] : memref<1x8x128xf32, #tpu.memory_space<vmem>>, vector<1x8x128xf32>
    %17 = vector.shape_cast %16 : vector<1x8x128xf32> to vector<8x128xf32>
    %18 = arith.addf %17, %15 : vector<8x128xf32>
    %c0_9 = arith.constant 0 : index
    %c0_10 = arith.constant 0 : index
    %c0_11 = arith.constant 0 : index
    %19 = vector.load %arg4[%c0_9, %c0_10, %c0_11] : memref<1x8x128xf32, #tpu.memory_space<vmem>>, vector<1x8x128xf32>
    %20 = vector.shape_cast %19 : vector<1x8x128xf32> to vector<8x128xf32>
    %21 = vector.shape_cast %18 : vector<8x128xf32> to vector<1x8x128xf32>
    tpu.vector_store %arg4[%c0_9, %c0_10, %c0_11], %21 {strides = array<i32>} : memref<1x8x128xf32, #tpu.memory_space<vmem>>, vector<1x8x128xf32>,
    return
  }
  func.func @transform_0(%arg0: i32, %arg1: i32) -> (i32, i32) {
    %c1_i32 = arith.constant 1 : i32
    %0 = arith.muli %arg0, %c1_i32 : i32
    %1 = arith.addi %0, %arg1 : i32
    %c0_i32 = arith.constant 0 : i32
    %c0_i32_0 = arith.constant 0 : i32
    return %1, %c0_i32 : i32, i32
  }
  func.func @transform_1(%arg0: i32, %arg1: i32) -> (i32, i32) {
    %c1_i32 = arith.constant 1 : i32
    %0 = arith.muli %arg0, %c1_i32 : i32
    %1 = arith.addi %0, %arg1 : i32
    %c0_i32 = arith.constant 0 : i32
    %c0_i32_0 = arith.constant 0 : i32
    return %1, %c0_i32 : i32, i32
  }
  func.func @transform_2(%arg0: i32, %arg1: i32) -> (i32, i32, i32) {
    %c0_i32 = arith.constant 0 : i32
    %c0_i32_0 = arith.constant 0 : i32
    %c0_i32_1 = arith.constant 0 : i32
    return %arg0, %c0_i32, %c0_i32_0 : i32, i32, i32
  }
}

</mosaic_0001>

<llo_original>
// kernel: ordinal_loss.1
$region0: #{ordinal_loss.1}
  #allocation0 [shape = 'u32[]', space=smem, size = 0x4, offset = 0x4, fixed_abs, tag = 'smem constant byte address 0x4 - core index']
  #allocation1 [shape = 'u32[72,128]{1,0:T(1,128)}', space=vmem, size = 0x9000, scoped, tag = 'internal scratch']
  %s0 = inlined_call_operand.vmem [shape: f32[16,128], index: 0, kind: input, shape index: {}]
  %s1 = inlined_call_operand.vmem [shape: f32[16,128], index: 1, kind: input, shape index: {}]
  %s2 = inlined_call_operand.vmem [shape: f32[1,8,128], index: 2, kind: output, shape index: {}]
  %s3 = sld [smem:[#allocation0]]
  $region22: #{ordinal_loss.1} parent=0
    _
  %s5 = ssub.s32 1, %s3
  %s6 = scalar_select 0, %s5, %s3
  // Predicated region
  $region2: #{ordinal_loss.1} parent=0 // pred_check
    _
  $region3: #{ordinal_loss.1} parent=0 // pred_check_branch
    %8 = sbr.rel (0) target = $region5
  $region4: #{ordinal_loss.1} parent=0 // pred_region
    %s9 = sadd.s32 0, 0
    %s10 = smul.u32 2, %s9
    %p11 = scmp.lt.s32.totalorder %s10, 1
    %s12 = scalar_select %p11, %s10, 1
    %s13 = smul.addr %s12, 8
    %s14 = scalar_lea.vmem %s0, %s13
    %s15 = sadd.s32 0, 0
    %s16 = smul.u32 2, %s15
  $region5: #{ordinal_loss.1} parent=0 // pred_fallthru
    _
  // Predicated region
  $region6: #{ordinal_loss.1} parent=0 // pred_check
    _
  $region7: #{ordinal_loss.1} parent=0 // pred_check_branch
    %18 = sbr.rel (0) target = $region9
  $region8: #{ordinal_loss.1} parent=0 // pred_region
    %s19 = sadd.s32 0, 0
    %s20 = smul.u32 2, %s19
    %p21 = scmp.lt.s32.totalorder %s20, 1
    %s22 = scalar_select %p21, %s20, 1
    %s23 = smul.addr %s22, 8
    %s24 = scalar_lea.vmem %s1, %s23
    %s25 = sadd.s32 0, 0
    %s26 = smul.u32 2, %s25
  $region9: #{ordinal_loss.1} parent=0 // pred_fallthru
    _
  %s27 = sadd.s32 0, 0
  %s28 = smul.u32 2, %s27
  %p29 = scmp.lt.s32.totalorder %s28, 1
  %s30 = scalar_select %p29, %s28, 1
  %s31 = smul.addr %s30, 8
  %s32 = scalar_lea.vmem %s0, %s31
  %s33 = sadd.s32 0, 0
  %s34 = smul.u32 2, %s33
  %p35 = scmp.lt.s32.totalorder %s34, 1
  %s36 = scalar_select %p35, %s34, 1
  %s37 = smul.addr %s36, 8
  %s38 = scalar_lea.vmem %s1, %s37
  %s39 = sadd.s32 0, 0
  %s40 = smul.u32 2, %s39
  %p41 = scmp.lt.s32.totalorder %s40, 1
  %s42 = scalar_select %p41, %s40, 1
  %s43 = smul.addr %s42, 8
  %s44 = scalar_lea.vmem %s0, %s43
  %s45 = sadd.s32 0, 0
  %s46 = smul.u32 2, %s45
  %s47 = sadd.s32 0, 0
  %s48 = smul.u32 2, %s47
  %p49 = scmp.lt.s32.totalorder %s48, 1
  %s50 = scalar_select %p49, %s48, 1
  %s51 = smul.addr %s50, 8
  %s52 = scalar_lea.vmem %s1, %s51
  %s53 = sadd.s32 0, 0
  %s54 = smul.u32 2, %s53
  %p55 = scmp.eq.s32.totalorder 0, 0
  // Predicated region
  $region10: #{ordinal_loss.1} parent=0 // pred_check
    %p56 = pneg %p55
  $region11: #{ordinal_loss.1} parent=0 // pred_check_branch
    %58 = sbr.rel (%p56) target = $region13
  $region12: #{ordinal_loss.1} parent=0 // pred_region
    %59 = vst [vmem:[%s2] sm:$0xff] 0.0
  $region13: #{ordinal_loss.1} parent=0 // pred_fallthru
    _
  %v60 = vld [vmem:[%s44] sm:$0xff]
  %v61 = vld [vmem:[%s44 + $0x8] sm:$0xff]
  %v62 = vld [vmem:[%s52] sm:$0xff]
  %v63 = vld [vmem:[%s52 + $0x8] sm:$0xff]
  %v64 = vlog2.pop %v60
  %v65 = vmul.f32 %v64, 0.6931472
  %v66 = vlog2.pop %v61
  %v67 = vmul.f32 %v66, 0.6931472
  %v68 = vmul.f32 %v62, %v65
  %v69 = vmul.f32 %v63, %v67
  %v70 = vsub.f32 1.0, %v62
  %v71 = vsub.f32 1.0, %v63
  %v72 = vsub.f32 1.0, %v60
  %v73 = vsub.f32 1.0, %v61
  %v74 = vlog2.pop %v72
  %v75 = vmul.f32 %v74, 0.6931472
  %v76 = vlog2.pop %v73
  %v77 = vmul.f32 %v76, 0.6931472
  %v78 = vmul.f32 %v70, %v75
  %v79 = vmul.f32 %v71, %v77
  %v80 = vadd.f32 %v68, %v78
  %v81 = vadd.f32 %v69, %v79
  %v82 = vadd.f32 %v80, %v81
  %v83 = vld [vmem:[%s2] sm:$0xff]
  %v84 = vadd.f32 %v83, %v82
  %85 = vst [vmem:[%s2] sm:$0xff] %v84
  // Predicated region
  $region14: #{ordinal_loss.1} parent=0 // pred_check
    _
  $region15: #{ordinal_loss.1} parent=0 // pred_check_branch
    %87 = sbr.rel (0) target = $region17
  $region16: #{ordinal_loss.1} parent=0 // pred_region
    _
  $region17: #{ordinal_loss.1} parent=0 // pred_fallthru
    _
  // Predicated region
  $region18: #{ordinal_loss.1} parent=0 // pred_check
    _
  $region19: #{ordinal_loss.1} parent=0 // pred_check_branch
    %89 = sbr.rel (0) target = $region21
  $region20: #{ordinal_loss.1} parent=0 // pred_region
    _
  $region21: #{ordinal_loss.1} parent=0 // pred_fallthru
    _

</llo_original>
